<compile_context>
chip_gen: v7x
topology: tpu7x:2x2x1
jax: 0.10.0
libtpu: 0.0.40
codegen_flags: <defaults>
</compile_context>

<pallas_src>
import functools

import numpy as np
import jax
import jax.numpy as jnp
from jax.experimental import pallas as pl
from jax.experimental.pallas import tpu as pltpu


# ----------------------------------------------------------------------------
# Lane-dense 1x1 conv:  (Cout, Cin) @ (Cin, L),  L = B*H*W,  optional per-batch
# bias fused in-kernel (batch index = lane // (H*W)).
# ----------------------------------------------------------------------------

def _conv1x1_kernel(x_ref, w_ref, o_ref):
    o_ref[...] = jnp.dot(w_ref[...].astype(jnp.bfloat16),
                         x_ref[...].astype(jnp.bfloat16),
                         preferred_element_type=jnp.float32)


def _conv1x1_bias_kernel(x_ref, w_ref, b_ref, o_ref, *, hw, lane_tile, n_batch):
    acc = jnp.dot(w_ref[...].astype(jnp.bfloat16),
                  x_ref[...].astype(jnp.bfloat16),
                  preferred_element_type=jnp.float32)            # (Cout, lane_tile)
    lane = (jax.lax.broadcasted_iota(jnp.int32, acc.shape, 1)
            + pl.program_id(0) * lane_tile)
    b_idx = lane // hw                                           # batch of each lane
    bias = b_ref[...]                                            # (Cout, n_batch)
    for b in range(n_batch):                                     # small static unroll
        acc = acc + jnp.where(b_idx == b, bias[:, b:b + 1], 0.0)
    o_ref[...] = acc


def _pick_lane_tile(L, cin, cout, max_bytes=4 << 20):
    """Lane tile: multiple of 128, VMEM-capped, >=2 grid steps when possible."""
    if L <= 256:
        return L
    cap_elems = max_bytes // ((cin + cout) * 4)
    t = min(L, 16384, max(128, (cap_elems // 128) * 128))
    t = max(128, (t // 128) * 128)
    if pl.cdiv(L, t) < 2:                  # expose 2 parallel steps for v7x megacore
        half = max(128, ((pl.cdiv(L, 2) + 127) // 128) * 128)
        t = min(t, half)
    return t


def conv1x1(x_cl, w_oc_ic, bias_cb=None, hw=None):
    """x_cl: (Cin, L) f32, w: (Cout, Cin).  Optional bias_cb: (Cout, B), L = B*hw."""
    Cin, L = x_cl.shape
    Cout = w_oc_ic.shape[0]
    lt = _pick_lane_tile(L, Cin, Cout)
    grid = (pl.cdiv(L, lt),)
    in_specs = [pl.BlockSpec((Cin, lt), lambda j: (0, j)),
                pl.BlockSpec((Cout, Cin), lambda j: (0, 0))]
    if bias_cb is None:
        kernel = _conv1x1_kernel
        args = (x_cl, w_oc_ic)
    else:
        n_batch = bias_cb.shape[1]
        kernel = functools.partial(_conv1x1_bias_kernel, hw=hw, lane_tile=lt,
                                   n_batch=n_batch)
        in_specs.append(pl.BlockSpec((Cout, n_batch), lambda j: (0, 0)))
        args = (x_cl, w_oc_ic, bias_cb)
    return pl.pallas_call(
        kernel,
        out_shape=jax.ShapeDtypeStruct((Cout, L), jnp.float32),
        grid=grid,
        in_specs=in_specs,
        out_specs=pl.BlockSpec((Cout, lt), lambda j: (0, j)),
        compiler_params=pltpu.CompilerParams(dimension_semantics=("parallel",)),
    )(*[a.astype(jnp.float32) for a in args])


# ----------------------------------------------------------------------------
# Multiscale separable resize (+ optional fused exp / normalize_normals) with the
# mean over scales accumulated in VMEM.  One launch for all scales and the mean.
#   xs:      (S, B, C*Hin, Win)  (per-scale outputs zero-padded to common Hin/Win)
#   wy_all:  (S, Hout, Hin)      (zero columns for padded rows)
#   wxt_all: (S, Win, Wout)      (zero rows for padded cols)
# Output: (B, C*Hout, Wout) = mean_s( head_s(resize_s(xs_s)) )
# ----------------------------------------------------------------------------

def _resize_mean_kernel(x_ref, wy_ref, wxt_ref, o_ref, acc_ref, *,
                        C, h_in, inv_n, apply_exp, apply_normalize, mm_dtype):
    s = pl.program_id(2)
    x = x_ref[...]                                             # (C*h_in, w_in)
    if apply_exp:
        x = jnp.exp(x)                                         # EUP, hidden under MXU
    # W-direction pass: fold C into M for better MXU fill, lane-dense result.
    t = jnp.dot(x.astype(mm_dtype), wxt_ref[...].astype(mm_dtype),
                preferred_element_type=jnp.float32)            # (C*h_in, wt)
    wy = wy_ref[...].astype(mm_dtype)                          # (h_out, h_in)
    # H-direction pass: per-channel static loop (no kron zero-block MXU waste).
    ys = [jnp.dot(wy, t[c * h_in:(c + 1) * h_in].astype(mm_dtype),
                  preferred_element_type=jnp.float32) for c in range(C)]
    if apply_normalize:
        nx, ny, nz, kap = ys
        inv = jax.lax.rsqrt(nx * nx + ny * ny + nz * nz + 1e-6)
        kap = jnp.where(kap > 0.0, kap,
                        jnp.exp(jnp.minimum(kap, 0.0)) - 1.0) + 1.0 + 0.01  # ELU+1+min_kappa
        ys = [nx * inv, ny * inv, nz * inv, kap]
    r = (ys[0] if C == 1 else jnp.concatenate(ys, axis=0)) * inv_n          # (C*h_out, wt)

    @pl.when(s == 0)
    def _init():
        acc_ref[...] = r

    @pl.when(s > 0)
    def _accum():
        acc_ref[...] = acc_ref[...] + r

    @pl.when(s == pl.num_programs(2) - 1)
    def _finalize():
        o_ref[...] = acc_ref[...]                               # single lane-dense store


def pallas_multiscale_resize_mean(xs, wy_all, wxt_all, *, C, h_out, w_out,
                                  apply_exp=False, apply_normalize=False,
                                  mm_dtype=jnp.bfloat16):
    S, B, CH, w_in = xs.shape
    h_in = CH // C
    wt = w_out if w_out <= 512 else 512          # Wout tile: VMEM guard (v7x) + parallel axis
    n_wt = pl.cdiv(w_out, wt)
    kernel = functools.partial(
        _resize_mean_kernel, C=C, h_in=h_in, inv_n=1.0 / S,
        apply_exp=apply_exp, apply_normalize=apply_normalize, mm_dtype=mm_dtype)
    return pl.pallas_call(
        kernel,
        out_shape=jax.ShapeDtypeStruct((B, C * h_out, w_out), jnp.float32),
        grid=(B, n_wt, S),                       # scales last (reduction axis)
        in_specs=[
            pl.BlockSpec((None, None, CH, w_in), lambda b, wj, s: (s, b, 0, 0)),
            pl.BlockSpec((None, h_out, h_in), lambda b, wj, s: (s, 0, 0)),
            pl.BlockSpec((None, w_in, wt), lambda b, wj, s: (s, 0, wj)),
        ],
        out_specs=pl.BlockSpec((None, C * h_out, wt), lambda b, wj, s: (b, 0, wj)),
        scratch_shapes=[pltpu.VMEM((C * h_out, wt), jnp.float32)],
        compiler_params=pltpu.CompilerParams(
            dimension_semantics=("parallel", "parallel", "arbitrary")),
    )(xs.astype(jnp.float32), wy_all.astype(jnp.float32), wxt_all.astype(jnp.float32))


# ----------------------------------------------------------------------------
# AFP: all kept scales' pooled features -> queries in ONE launch (grid over scales).
# ----------------------------------------------------------------------------

def _afp_kernel(p_ref, w_ref, o_ref):
    o_ref[...] = jnp.dot(p_ref[...].astype(jnp.bfloat16),
                         w_ref[...].astype(jnp.bfloat16),
                         preferred_element_type=jnp.float32)


def pallas_afp(pooled_sbh, w_shq):
    S, B, hidden = pooled_sbh.shape
    NQH = w_shq.shape[2]
    return pl.pallas_call(
        _afp_kernel,
        out_shape=jax.ShapeDtypeStruct((S, B, NQH), jnp.float32),
        grid=(S,),
        in_specs=[pl.BlockSpec((None, B, hidden), lambda s: (s, 0, 0)),
                  pl.BlockSpec((None, hidden, NQH), lambda s: (s, 0, 0))],
        out_specs=pl.BlockSpec((None, B, NQH), lambda s: (s, 0, 0)),
        compiler_params=pltpu.CompilerParams(dimension_semantics=("parallel",)),
    )(pooled_sbh.astype(jnp.float32), w_shq.astype(jnp.float32))


# ------------------- interpolation weight matrices (host glue) -------------------

def bilinear_matrix(n_out, n_in):
    """align_corners=True bilinear interpolation as an (n_out, n_in) matrix."""
    W = np.zeros((n_out, n_in), dtype=np.float32)
    if n_out == 1:
        W[0, 0] = 1.0
        return W
    scale = (n_in - 1) / (n_out - 1)
    for i in range(n_out):
        src = i * scale
        i0 = min(int(np.floor(src)), n_in - 1)
        i1 = min(i0 + 1, n_in - 1)
        t = src - i0
        W[i, i0] += 1.0 - t
        W[i, i1] += t
    return W


def _cubic_weights(t, A=-0.75):
    def k1(x):
        return ((A + 2) * x - (A + 3)) * x * x + 1
    def k2(x):
        return ((A * x - 5 * A) * x + 8 * A) * x - 4 * A
    return [k2(t + 1), k1(t), k1(1 - t), k2(2 - t)]


def bicubic_matrix(n_out, n_in):
    """align_corners=True bicubic (Keys, A=-0.75, clamped taps) as a matrix."""
    W = np.zeros((n_out, n_in), dtype=np.float32)
    if n_out == 1:
        W[0, 0] = 1.0
        return W
    scale = (n_in - 1) / (n_out - 1)
    for i in range(n_out):
        src = i * scale
        i0 = int(np.floor(src))
        t = src - i0
        ws = _cubic_weights(t)
        for k in range(4):
            idx = min(max(i0 - 1 + k, 0), n_in - 1)
            W[i, idx] += ws[k]
    return W


# ---------------- synthetic stand-ins for injected sub-modules -------------------
# Everything runs in channel-major (C, B, H, W) layout so 1x1 convs are lane-dense.

def avg_pool_cb(x, s):
    C, B, H, W = x.shape
    return x.reshape(C, B, H // s, s, W // s, s).mean(axis=(3, 5))


def pixel_encoder(image_cb, enc_ws):
    feats = []
    for lvl, w in enumerate(enc_ws):
        stride = 2 ** (lvl + 1)
        p = avg_pool_cb(image_cb, stride)                  # (3, B, Hs, Ws)
        C, B, Hs, Ws = p.shape
        y = conv1x1(p.reshape(C, B * Hs * Ws), w)          # (d, B*Hs*Ws)
        feats.append(y.reshape(w.shape[0], B, Hs, Ws))
    return tuple(feats)                                    # high-res -> low-res


def pixel_decoder(xs, fd_ws, hidden):
    """fpn and dec 1x1 convs fused: one (2*hidden, d) matmul per level, split rows."""
    fpn, dec = [], []
    for x, w_fd in zip(xs, fd_ws):
        d, B, Hs, Ws = x.shape
        y = conv1x1(x.reshape(d, B * Hs * Ws), w_fd)       # (2*hidden, B*HW)
        fpn.append(y[:hidden].reshape(hidden, B, Hs, Ws))
        dec.append(y[hidden:].reshape(hidden, B, Hs, Ws))
    return tuple(fpn), tuple(dec)


def afp(decoder_outputs, afp_ws, num_queries, hidden):
    # TODO(synk): tiny global-average-pool left to XLA (2*hidden*B elems per scale).
    pooled = jnp.stack([x.mean(axis=(2, 3)).T for x in decoder_outputs], axis=0)  # (S,B,h)
    w_all = jnp.stack(afp_ws, axis=0)                                             # (S,h,nq*h)
    q_all = pallas_afp(pooled, w_all)                                             # (S,B,nq*h)
    B = pooled.shape[1]
    return tuple(q_all[s].reshape(B, num_queries, hidden)
                 for s in range(len(decoder_outputs)))


def isd(fpn_outputs, idrs, isd_ws, q_ws):
    outs = []
    for x, q, w, wq in zip(fpn_outputs, idrs, isd_ws, q_ws):
        hdim, B, Hs, Ws = x.shape
        # TODO(synk): (B,hidden)@(hidden,out_c) bias matmul is 2 rows -> left to XLA.
        bias_cb = jnp.dot(q.mean(axis=1), wq).T            # (out_c, B)
        y = conv1x1(x.reshape(hdim, B * Hs * Ws), w, bias_cb=bias_cb, hw=Hs * Ws)
        outs.append(y.reshape(w.shape[0], B, Hs, Ws))      # (out_c, B, Hs, Ws)
    return tuple(outs)


# ----------------------------- IDiscEqui head -------------------------------------

def idisc_equi_head(outs_cb, original_shape):
    """outs_cb: per-scale ISD outputs in (C, B, H, W) layout."""
    C, B = outs_cb[-1].shape[0], outs_cb[-1].shape[1]
    tgt_h, tgt_w = outs_cb[-1].shape[-2:]
    h_max = max(o.shape[2] for o in outs_cb)
    w_max = max(o.shape[3] for o in outs_cb)
    xs, wys, wxts = [], [], []
    for o in outs_cb:
        Hs, Ws = o.shape[-2:]
        o_bchw = jnp.transpose(o, (1, 0, 2, 3))                               # (B,C,Hs,Ws)
        o_pad = jnp.pad(o_bchw, ((0, 0), (0, 0), (0, h_max - Hs), (0, w_max - Ws)))
        xs.append(o_pad.reshape(B, C * h_max, w_max))
        wy = np.zeros((tgt_h, h_max), np.float32)
        wy[:, :Hs] = bilinear_matrix(tgt_h, Hs)
        wxt = np.zeros((w_max, tgt_w), np.float32)
        wxt[:Ws, :] = bilinear_matrix(tgt_w, Ws).T
        wys.append(wy)
        wxts.append(wxt)
    xs = jnp.stack(xs, axis=0)                                                # (S,B,C*hm,wm)
    wy_all = jnp.asarray(np.stack(wys, axis=0))
    wxt_all = jnp.asarray(np.stack(wxts, axis=0))
    # One launch: per-scale exp / normalize + bilinear resize + mean over scales.
    mean_out = pallas_multiscale_resize_mean(
        xs, wy_all, wxt_all, C=C, h_out=tgt_h, w_out=tgt_w,
        apply_exp=(C == 1), apply_normalize=(C != 1),
        mm_dtype=jnp.bfloat16)                                                # (B,C*th,tw)
    # Final full-resolution resize (bilinear for depth, bicubic otherwise); f32 matmuls.
    Ho, Wo = int(original_shape[0]), int(original_shape[1])
    if C == 1:
        wy_f, wxt_f = bilinear_matrix(Ho, tgt_h), bilinear_matrix(Wo, tgt_w).T
    else:
        wy_f, wxt_f = bicubic_matrix(Ho, tgt_h), bicubic_matrix(Wo, tgt_w).T
    final = pallas_multiscale_resize_mean(
        mean_out[None], jnp.asarray(wy_f)[None], jnp.asarray(wxt_f)[None],
        C=C, h_out=Ho, w_out=Wo, mm_dtype=jnp.float32)                        # (B,C*Ho,Wo)
    final = final.reshape(B, C, Ho, Wo)
    return final if C == 1 else final[:, :3]


def idisc_equi_forward(image, params, gt=None, mask=None):
    losses = {'opt': {}, 'stat': {}}
    original_shape = gt.shape[-2:] if gt is not None else image.shape[-2:]
    hidden = params['hidden']
    # one entry transpose to channel-major layout; everything downstream lane-dense
    image_cb = jnp.transpose(image, (1, 0, 2, 3))                  # (3, B, H, W)
    encoder_outputs = pixel_encoder(image_cb, params['enc'])
    encoder_outputs = tuple(encoder_outputs[::-1])                 # invert_encoder_output_order
    fpn_outputs, decoder_outputs = pixel_decoder(encoder_outputs, params['fpn_dec'], hidden)
    amr = params['afp_min_resolution']
    decoder_outputs = tuple(decoder_outputs[amr:])                 # filter relevant resolutions
    fpn_outputs = tuple(fpn_outputs[amr:])
    idrs = afp(decoder_outputs, params['afp'], params['num_queries'], hidden)
    outs_cb = isd(fpn_outputs, idrs, params['isd'], params['isd_q'])
    out = idisc_equi_head(outs_cb, original_shape)
    outs_nchw = tuple(jnp.transpose(o, (1, 0, 2, 3)) for o in outs_cb)   # NCHW like torch
    # TODO(synk): training branch (gt is not None) uses an injected loss module; omitted.
    return out, losses, {'outs': outs_nchw, 'queries': idrs}


# ------------------------------- parameters ---------------------------------------

def build_params(key, out_channels=4, embed_dims=(8, 16, 24, 32), hidden=32,
                 num_queries=8, afp_min_resolution=1):
    keys = jax.random.split(key, 64)
    it = iter(range(64))

    def nxt(shape, scale=0.05):
        return scale * jax.random.normal(keys[next(it)], shape, dtype=jnp.float32)

    inv_dims = tuple(embed_dims[::-1])
    n_kept = len(embed_dims) - afp_min_resolution
    return {
        'enc':     [nxt((d, 3)) for d in embed_dims],
        # fpn and dec 1x1-conv weights concatenated along Cout -> one conv per level
        'fpn_dec': [nxt((2 * hidden, d)) for d in inv_dims],
        'afp':     [nxt((hidden, num_queries * hidden)) for _ in range(n_kept)],
        'isd':     [nxt((out_channels, hidden)) for _ in range(n_kept)],
        'isd_q':   [nxt((hidden, out_channels)) for _ in range(n_kept)],
        'hidden': hidden,
        'num_queries': num_queries,
        'afp_min_resolution': afp_min_resolution,
    }


if __name__ == "__main__":
    key = jax.random.PRNGKey(0)
    k_img, k_p1, k_p2 = jax.random.split(key, 3)
    image = jax.random.normal(k_img, (2, 3, 32, 32), dtype=jnp.float32)

    # Surface-normal case: 4 output channels -> normalize_normals + bicubic final resize.
    params4 = build_params(k_p1, out_channels=4)
    out4, losses4, aux4 = idisc_equi_forward(image, params4)
    out4 = jax.block_until_ready(out4)
    assert out4.shape == (2, 3, 32, 32), out4.shape
    assert len(aux4['outs']) == 3 and len(aux4['queries']) == 3
    assert aux4['outs'][0].shape == (2, 4, 4, 4)
    assert bool(jnp.all(jnp.isfinite(out4)))

    # Depth case: 1 output channel -> exp + bilinear final resize.
    params1 = build_params(k_p2, out_channels=1)
    out1, losses1, aux1 = idisc_equi_forward(image, params1)
    out1 = jax.block_until_ready(out1)
    assert out1.shape == (2, 1, 32, 32), out1.shape
    assert bool(jnp.all(jnp.isfinite(out1)))

    print("KERNEL_OK")
</pallas_src>

<mosaic_0001>
module attributes {stable_mosaic.version = 11 : i64} {
  func.func @_conv1x1_kernel(%arg0: i32, %arg1: memref<3x256xf32, #tpu.memory_space<vmem>>, %arg2: memref<8x3xf32, #tpu.memory_space<vmem>>, %arg3: memref<8x256xf32, #tpu.memory_space<vmem>>) attributes {dimension_semantics = [#tpu.dimension_semantics<parallel>], iteration_bounds = array<i64: 2>, scalar_prefetch = 0 : i64, scratch_operands = 0 : i64, tpu.core_type = #tpu.core_type<tc>, window_params = [{transform_indices = @transform_0, window_bounds = array<i64: 3, 256>}, {pipeline_mode = #tpu.pipeline_mode<synchronous>, transform_indices = @transform_1, window_bounds = array<i64: 8, 3>}, {transform_indices = @transform_2, window_bounds = array<i64: 8, 256>}]} {
    %c0 = arith.constant 0 : index
    %c0_0 = arith.constant 0 : index
    %0 = vector.load %arg2[%c0, %c0_0] : memref<8x3xf32, #tpu.memory_space<vmem>>, vector<8x3xf32>
    %1 = arith.truncf %0 : vector<8x3xf32> to vector<8x3xbf16>
    %c0_1 = arith.constant 0 : index
    %c0_2 = arith.constant 0 : index
    %2 = vector.load %arg1[%c0_1, %c0_2] : memref<3x256xf32, #tpu.memory_space<vmem>>, vector<3x256xf32>
    %3 = arith.truncf %2 : vector<3x256xf32> to vector<3x256xbf16>
    %cst = arith.constant dense<0.000000e+00> : vector<8x256xf32>
    %4 = tpu.matmul %1, %3, %cst {dimension_numbers = #tpu.dot_dimension_numbers<[1], [0], [0], [1], [0, 0, 1, 1], [], []>} : vector<8x3xbf16>, vector<3x256xbf16>, vector<8x256xf32> -> vector<8x256xf32>
    %c0_3 = arith.constant 0 : index
    %c0_4 = arith.constant 0 : index
    %5 = vector.load %arg3[%c0_3, %c0_4] : memref<8x256xf32, #tpu.memory_space<vmem>>, vector<8x256xf32>
    tpu.vector_store %arg3[%c0_3, %c0_4], %4 {strides = array<i32>} : memref<8x256xf32, #tpu.memory_space<vmem>>, vector<8x256xf32>,
    return
  }
  func.func @transform_0(%arg0: i32) -> (i32, i32) {
    %c0_i32 = arith.constant 0 : i32
    %c0_i32_0 = arith.constant 0 : i32
    return %c0_i32, %arg0 : i32, i32
  }
  func.func @transform_1(%arg0: i32) -> (i32, i32) {
    %c0_i32 = arith.constant 0 : i32
    %c0_i32_0 = arith.constant 0 : i32
    %c0_i32_1 = arith.constant 0 : i32
    return %c0_i32, %c0_i32_0 : i32, i32
  }
  func.func @transform_2(%arg0: i32) -> (i32, i32) {
    %c0_i32 = arith.constant 0 : i32
    %c0_i32_0 = arith.constant 0 : i32
    return %c0_i32, %arg0 : i32, i32
  }
}

</mosaic_0001>

<llo_original>
// kernel: tpu_custom_call.1
$region0: #{tpu_custom_call.1}
  #allocation0 [shape = 'u32[]', space=smem, size = 0x4, offset = 0x4, fixed_abs, tag = 'smem constant byte address 0x4 - core index']
  #allocation1 [shape = 'u32[144,128]{1,0:T(1,128)}', space=vmem, size = 0x12000, scoped, tag = 'internal scratch']
  %s0 = inlined_call_operand.hbm [shape: f32[3,512], index: 0, kind: input, shape index: {}]
  %s1 = inlined_call_operand.vmem [shape: f32[8,3], index: 1, kind: input, shape index: {}]
  %s2 = inlined_call_operand.hbm [shape: f32[8,512], index: 2, kind: output, shape index: {}]
  %s3 = sld [smem:[#allocation0]]
  $region45: #{tpu_custom_call.1} parent=0
    _
  %s5 = ssub.s32 1, %s3
  %s6 = scalar_select 0, %s5, %s3
  $region1: #{tpu_custom_call.1} parent=0
    #allocation2 [shape = 'u8[8192]{0}', space=vmem, size = 0x2000, scoped, tag = 'input window, operand 0']
    #allocation3 [shape = 's32[2]{0}', space=sflag, size = 0x8, scoped, tag = 'scoped memory for tpu_custom_call.1']
    #allocation4 [shape = 's32[2]{0}', space=sflag, size = 0x8, scoped, tag = 'scoped memory for tpu_custom_call.1']
    #allocation5 [shape = 'u8[16384]{0}', space=vmem, size = 0x4000, scoped, tag = 'output window, operand 0']
    %7 = vsyncpa [#allocation3], 0
    %s8 = scalar_lea.sflag [#allocation3], 1
    %9 = vsyncpa %s8, 0
    %10 = vsyncpa [#allocation4], 0
    %s11 = scalar_lea.sflag [#allocation4], 1
    %12 = vsyncpa %s11, 0
    loop: start=0, step=1, limit=4
    $region2: #{tpu_custom_call.1} parent=1 // loop_pre_header
      _
    $region3: #{tpu_custom_call.1} parent=1 // loop_header
      %s14 = sphi 0, %s18
      %p15 = scmp.ge.s32.totalorder %s14, 4
      %s24 = sphi 0, %s26
      %s27 = sphi 0, %s24
      %s28 = sphi 0, %s27
      %s44 = sphi 0, %s28
      %s48 = sphi 0, %s48
      %s50 = sphi 0, %s48
      %s51 = sphi 0, %s50
      %s65 = sphi 0, %s51
      %s71 = sphi 0, %s73
      %s74 = sphi 0, %s71
      %s75 = sphi 0, %s74
      %s91 = sphi 0, %s75
    $region4: #{tpu_custom_call.1} parent=1 // loop_header_branch
      %17 = sbr.rel (%p15) target = $region8
    $region5: #{tpu_custom_call.1} parent=1 // loop_body
      %s19 = ssub.s32 %s14, 1
      %s20 = ssub.s32 %s14, 2
      %s21 = sadd.s32 %s14, 1
      %s22 = ssub.s32 %s14, %s21
      %p23 = scmp.eq.s32.totalorder %s22, 0
      %s25 = sadd.s32 %s24, 1
      %s26 = scalar_select %p23, %s24, %s25
      %p29 = pneg %p23
      %p30 = scmp.eq.s32.totalorder %s14, 1
      %p31 = por %p29, %p30
      %p32 = scmp.ne.s32.totalorder %s24, %s27
      %p33 = scmp.eq.s32.totalorder %s14, 0
      %p34 = por %p32, %p33
      %p35 = scmp.ne.s32.totalorder %s24, %s27
      %p36 = scmp.eq.s32.totalorder %s19, 1
      %p37 = por %p35, %p36
      %p38 = scmp.ne.s32.totalorder %s27, %s28
      %p39 = scmp.eq.s32.totalorder %s19, 0
      %p40 = por %p38, %p39
      %p41 = scmp.ne.s32.totalorder %s27, %s28
      %p42 = scmp.eq.s32.totalorder %s20, 1
      %p43 = por %p41, %p42
      %p45 = scmp.ne.s32.totalorder %s28, %s44
      %p46 = scmp.eq.s32.totalorder %s20, 0
      %p47 = por %p45, %p46
      %s49 = sadd.s32 %s48, 1
      %p52 = scmp.eq.s32.totalorder %s14, 1
      %p53 = scmp.ne.s32.totalorder %s48, %s50
      %p54 = scmp.eq.s32.totalorder %s14, 0
      %p55 = por %p53, %p54
      %p56 = scmp.ne.s32.totalorder %s48, %s50
      %p57 = scmp.eq.s32.totalorder %s19, 1
      %p58 = por %p56, %p57
      %p59 = scmp.ne.s32.totalorder %s50, %s51
      %p60 = scmp.eq.s32.totalorder %s19, 0
      %p61 = por %p59, %p60
      %p62 = scmp.ne.s32.totalorder %s50, %s51
      %p63 = scmp.eq.s32.totalorder %s20, 1
      %p64 = por %p62, %p63
      %p66 = scmp.ne.s32.totalorder %s51, %s65
      %p67 = scmp.eq.s32.totalorder %s20, 0
      %p68 = por %p66, %p67
      %s69 = ssub.s32 %s14, %s21
      %p70 = scmp.eq.s32.totalorder %s69, 0
      %s72 = sadd.s32 %s71, 1
      %s73 = scalar_select %p70, %s71, %s72
      %p76 = pneg %p70
      %p77 = scmp.eq.s32.totalorder %s14, 1
      %p78 = por %p76, %p77
      %p79 = scmp.ne.s32.totalorder %s71, %s74
      %p80 = scmp.eq.s32.totalorder %s14, 0
      %p81 = por %p79, %p80
      %p82 = scmp.ne.s32.totalorder %s71, %s74
      %p83 = scmp.eq.s32.totalorder %s19, 1
      %p84 = por %p82, %p83
      %p85 = scmp.ne.s32.totalorder %s74, %s75
      %p86 = scmp.eq.s32.totalorder %s19, 0
      %p87 = por %p85, %p86
      %p88 = scmp.ne.s32.totalorder %s74, %s75
      %p89 = scmp.eq.s32.totalorder %s20, 1
      %p90 = por %p88, %p89
      %p92 = scmp.ne.s32.totalorder %s75, %s91
      %p93 = scmp.eq.s32.totalorder %s20, 0
      %p94 = por %p92, %p93
      %p95 = scmp.le.s32.totalorder 1, %s14
      %p96 = scmp.lt.s32.totalorder %s14, 3
      %p97 = pnand %p95, %p96
      %p98 = pneg %p97
      // Predicated region
      $region9: #{tpu_custom_call.1} parent=5 // pred_check
        _
      $region10: #{tpu_custom_call.1} parent=5 // pred_check_branch
        %100 = sbr.rel (%p97) target = $region12
      $region11: #{tpu_custom_call.1} parent=5 // pred_region
        %s101 = ssub.s32 %s14, 1
        // Predicated region
        $region13: #{tpu_custom_call.1} parent=11 // pred_check
          %p102 = pneg %p61
        $region14: #{tpu_custom_call.1} parent=11 // pred_check_branch
          %104 = sbr.rel (%p102) target = $region16
        $region15: #{tpu_custom_call.1} parent=11 // pred_region
          _
        $region16: #{tpu_custom_call.1} parent=11 // pred_fallthru
          _
      $region12: #{tpu_custom_call.1} parent=5 // pred_fallthru
        _
      %p105 = scmp.lt.s32.totalorder %s14, 2
      // Predicated region
      $region17: #{tpu_custom_call.1} parent=5 // pred_check
        %p106 = pneg %p105
      $region18: #{tpu_custom_call.1} parent=5 // pred_check_branch
        %108 = sbr.rel (%p106) target = $region20
      $region19: #{tpu_custom_call.1} parent=5 // pred_region
        // Predicated region
        $region21: #{tpu_custom_call.1} parent=19 // pred_check
          %p109 = pneg %p34
        $region22: #{tpu_custom_call.1} parent=19 // pred_check_branch
          %111 = sbr.rel (%p109) target = $region24
        $region23: #{tpu_custom_call.1} parent=19 // pred_region
          %s112 = sand.u32 %s24, 1
          %s113 = scalar_lea.sflag [#allocation3], %s112
          %s114 = sand.u32 %s24, 1
          %s115 = smul.addr %s114, 8
          %s116 = scalar_lea.vmem [#allocation2], %s115
          %s117 = smul.u32 2, %s14
          %s119 = ssub.s32 128, 128
          %120 = vsyncadd %s113, %s119
          %s121 = smul.addr %s117, 64
          %s122 = scalar_lea.hbm %s0, %s121
          %s124 = sshll.u32 %s116, 4
          %s125 = int_to_ptr.vmem [resolvable:$true] %s124
          %127 = dma.hbm_to_vmem [thread:$0]  %s122, 128, %s125, %s113
        $region24: #{tpu_custom_call.1} parent=19 // pred_fallthru
          _
      $region20: #{tpu_custom_call.1} parent=5 // pred_fallthru
        _
      %p128 = scmp.le.s32.totalorder 1, %s14
      %p129 = scmp.lt.s32.totalorder %s14, 3
      %p130 = pnand %p128, %p129
      %p131 = pneg %p130
      // Predicated region
      $region25: #{tpu_custom_call.1} parent=5 // pred_check
        _
      $region26: #{tpu_custom_call.1} parent=5 // pred_check_branch
        %133 = sbr.rel (%p130) target = $region28
      $region27: #{tpu_custom_call.1} parent=5 // pred_region
        %s134 = ssub.s32 %s14, 1
        %s135 = sand.u32 %s27, 1
        %s136 = scalar_lea.sflag [#allocation3], %s135
        %s137 = sand.u32 %s27, 1
        %s138 = smul.addr %s137, 8
        %s139 = scalar_lea.vmem [#allocation2], %s138
        // Predicated region
        $region29: #{tpu_custom_call.1} parent=27 // pred_check
          %p140 = pneg %p40
        $region30: #{tpu_custom_call.1} parent=27 // pred_check_branch
          %142 = sbr.rel (%p140) target = $region32
        $region31: #{tpu_custom_call.1} parent=27 // pred_region
          %143 = dma.done %s136, 128
        $region32: #{tpu_custom_call.1} parent=27 // pred_fallthru
          _
        %s144 = sand.u32 %s27, 1
        %s145 = scalar_lea.sflag [#allocation3], %s144
        %s146 = sand.u32 %s27, 1
        %s147 = smul.addr %s146, 8
        %s148 = scalar_lea.vmem [#allocation2], %s147
        %p149 = pneg %p40
        %p150 = pneg %p37
        %p151 = pneg %p61
        %p152 = pneg %p58
        %p153 = pneg %p87
        %p154 = pneg %p84
        %s155 = sand.u32 %s74, 1
        %s156 = scalar_lea.sflag [#allocation4], %s155
        %s157 = sand.u32 %s74, 1
        %s158 = smul.addr %s157, 16
        %s159 = scalar_lea.vmem [#allocation5], %s158
        %s160 = smul.u32 2, %s19
        %s161 = smul.u32 2, %s19
        %v163 = vld [vmem:[%s1] sm:$0xff]
        %v164 = vpack.c.bf16 %v163, %v163
        %v165 = vld [vmem:[%s139] sm:$0x77]
        %v167 = vcombine.high %v165, %v165
        %v169 = vpack.c.bf16 %v165, %v165
        %v170 = vpack.c.bf16 %v167, %v167
        %vm171 = vcmask 23552
        %v173 = vsel %vm171, %v164, 0
        %vm175 = vcmask 1040384
        %vm176 = vcmask 1041408
        %v177 = vsel %vm175, 4294967295, 65535
        %v178 = vsel %vm176, %v177, 0
        %v180 = vand.u32 %v169, %v178
        %v183 = vand.u32 %v170, %v178
        %185 = vmatprep.subr.bf16.mxu0 %v183
        %186 = vmatpush1.bf16.msra.mxu0 %v180
        %187 = vmatprep.subr.bf16.mxu0 0
        %188 = vmatpush1.bf16.msra.mxu0 0
        %189 = vmatprep.subr.bf16.mxu0 0
        %190 = vmatpush1.bf16.msra.mxu0 0
        %191 = vmatprep.subr.bf16.mxu0 0
        %192 = vmatpush1.bf16.msra.mxu0 0
        %193 = vmatprep.subr.bf16.mxu0 0
        %194 = vmatpush1.bf16.msra.mxu0 0
        %195 = vmatprep.subr.bf16.mxu0 0
        %196 = vmatpush1.bf16.msra.mxu0 0
        %197 = vmatprep.subr.bf16.mxu0 0
        %198 = vmatpush1.bf16.msra.mxu0 0
        %199 = vmatprep.subr.bf16.mxu0 0
        %200 = vmatpush1.bf16.msra.mxu0 0
        %201 = vmatprep.subr.bf16.mxu0 0
        %202 = vmatpush1.bf16.msra.mxu0 0
        %203 = vmatprep.subr.bf16.mxu0 0
        %204 = vmatpush1.bf16.msra.mxu0 0
        %205 = vmatprep.subr.bf16.mxu0 0
        %206 = vmatpush1.bf16.msra.mxu0 0
        %207 = vmatprep.subr.bf16.mxu0 0
        %208 = vmatpush1.bf16.msra.mxu0 0
        %209 = vmatprep.subr.bf16.mxu0 0
        %210 = vmatpush1.bf16.msra.mxu0 0
        %211 = vmatprep.subr.bf16.mxu0 0
        %212 = vmatpush1.bf16.msra.mxu0 0
        %213 = vmatprep.subr.bf16.mxu0 0
        %214 = vmatpush1.bf16.msra.mxu0 0
        %215 = vmatprep.subr.bf16.mxu0 0
        %216 = vmatpush1.bf16.msra.mxu0 0
        %217 = vmatprep.mubr.bf16.mxu0 0
        %218 = vmatmul.mubr.bf16.gmra.mrb[0].mxu0 %v173
        %v219 = vpop.f32.mrb[0].mxu0
        %v220 = vadd.f32 0.0, %v219
        %v221 = vpop.f32.mrb[0].mxu0
        %v222 = vadd.f32 0.0, %v221
        %v223 = vpop.f32.mrb[0].mxu0
        %v224 = vpop.f32.mrb[0].mxu0
        %225 = vdwg.mxu0
        %226 = vst [vmem:[%s159] sm:$0xff] %v220
        %227 = vst [vmem:[%s159 + $0x8] sm:$0xff] %v222
        %s228 = sand.u32 %s74, 1
        %s229 = scalar_lea.sflag [#allocation4], %s228
        %s230 = sand.u32 %s74, 1
        %s231 = smul.addr %s230, 16
        %s232 = scalar_lea.vmem [#allocation5], %s231
        // Predicated region
        $region33: #{tpu_custom_call.1} parent=27 // pred_check
          %p233 = pneg %p84
        $region34: #{tpu_custom_call.1} parent=27 // pred_check_branch
          %235 = sbr.rel (%p233) target = $region36
        $region35: #{tpu_custom_call.1} parent=27 // pred_region
          %s236 = smul.u32 2, %s19
          %s238 = ssub.s32 256, 256
          %239 = vsyncadd %s229, %s238
          %s240 = smul.addr %s236, 128
          %s241 = scalar_lea.hbm %s2, %s240
          %s243 = sshll.u32 %s232, 4
          %s244 = int_to_ptr.vmem [resolvable:$true] %s243
          %246 = dma.vmem_to_hbm [thread:$0]  %s244, 256, %s241, %s229
        $region36: #{tpu_custom_call.1} parent=27 // pred_fallthru
          _
      $region28: #{tpu_custom_call.1} parent=5 // pred_fallthru
        _
      %p247 = scmp.le.s32.totalorder 2, %s14
      // Predicated region
      $region37: #{tpu_custom_call.1} parent=5 // pred_check
        %p248 = pneg %p247
      $region38: #{tpu_custom_call.1} parent=5 // pred_check_branch
        %250 = sbr.rel (%p248) target = $region40
      $region39: #{tpu_custom_call.1} parent=5 // pred_region
        %s251 = ssub.s32 %s14, 2
        // Predicated region
        $region41: #{tpu_custom_call.1} parent=39 // pred_check
          %p252 = pneg %p90
        $region42: #{tpu_custom_call.1} parent=39 // pred_check_branch
          %254 = sbr.rel (%p252) target = $region44
        $region43: #{tpu_custom_call.1} parent=39 // pred_region
          %s255 = sand.u32 %s75, 1
          %s256 = scalar_lea.sflag [#allocation4], %s255
          %s257 = sand.u32 %s75, 1
          %s258 = smul.addr %s257, 16
          %s259 = scalar_lea.vmem [#allocation5], %s258
          %260 = dma.done %s256, 256
        $region44: #{tpu_custom_call.1} parent=39 // pred_fallthru
          _
      $region40: #{tpu_custom_call.1} parent=5 // pred_fallthru
        _
    $region6: #{tpu_custom_call.1} parent=1 // loop_footer
      %s18 = sadd.s32 1, %s14
    $region7: #{tpu_custom_call.1} parent=1 // loop_footer_branch
      %13 = sbr.rel target = $region3
    $region8: #{tpu_custom_call.1} parent=1 // loop_exit
      _
    %261 = vsyncpa [#allocation3], 1
    %s262 = scalar_lea.sflag [#allocation3], 1
    %263 = vsyncpa %s262, 1
    %264 = vsyncpa [#allocation4], 1
    %s265 = scalar_lea.sflag [#allocation4], 1
    %266 = vsyncpa %s265, 1

</llo_original>
